<compile_context>
chip_gen: v6e
topology: v6e:2x2x1
jax: 0.10.0
libtpu: 0.0.40
codegen_flags: <defaults>
</compile_context>

<pallas_src>
import jax
import jax.numpy as jnp
from jax import lax
from jax.experimental import pallas as pl
from jax.experimental.pallas import tpu as pltpu


_STRIP = 8  # rows per inner strip (sublane granularity); bounds vreg live ranges


def _make_kernel(TH, W, H, n_tiles):
    f32 = jnp.float32
    partial_last = (H % TH) != 0          # last row-tile has < TH valid rows
    n_strips = TH // _STRIP

    def kernel(x_ref, y_ref, o_ref, bx_ref, by_ref, acc_ref):
        # x_ref, y_ref : (3, TH, W) blocks in the caller's native dtype.
        # bx_ref/by_ref: (TH+3, W) f32 halo buffers holding channel sums:
        #   rows [0:2]    carry = last 2 rows of the previous tile (zeros at t==0)
        #   rows [2:TH+2] this tile's rows (rows >= H zeroed on a partial tile)
        #   row  [TH+2]   permanent zeros (bottom image padding)
        t = pl.program_id(1)
        row0 = t * TH - 1                  # image row of output row j == 0

        @pl.when(t == 0)
        def _init():                       # new image: reset carry / pad / accum
            bx_ref[0:2, :] = jnp.zeros((2, W), f32)
            by_ref[0:2, :] = jnp.zeros((2, W), f32)
            bx_ref[TH + 2:TH + 3, :] = jnp.zeros((1, W), f32)
            by_ref[TH + 2:TH + 3, :] = jnp.zeros((1, W), f32)
            acc_ref[...] = jnp.zeros_like(acc_ref)

        @pl.when(t > 0)
        def _carry():                      # the two rows just above this tile
            bx_ref[0:2, :] = bx_ref[TH:TH + 2, :]
            by_ref[0:2, :] = by_ref[TH:TH + 2, :]

        def abs_grad(buf, r0, nrows):
            """|gx|+|gy| for output rows r0..r0+nrows-1 (buffer rows r0..r0+nrows+1)."""
            p = buf[pl.ds(r0, nrows + 2), :]                       # (nrows+2, W) f32
            zcol = jnp.zeros((nrows + 2, 1), f32)
            # full-width zero-padded horizontal neighbours (single pass; a
            # pltpu.roll(p, +/-1, axis=1) + border mask would be equivalent)
            left = jnp.concatenate([zcol, p[:, :W - 1]], axis=1)   # p[:, c-1]
            right = jnp.concatenate([p[:, 1:], zcol], axis=1)      # p[:, c+1]
            d = right - left                                       # horiz [-1, 0, 1]
            s = left + 2.0 * p + right                             # horiz [ 1, 2, 1]
            gx = d[0:nrows] + 2.0 * d[1:nrows + 1] + d[2:nrows + 2]
            gy = s[2:nrows + 2] - s[0:nrows]
            return jnp.abs(gx) + jnp.abs(gy)                       # (nrows, W)

        def rows_loss(r0, nrows):
            """Sum of |grad(x)-grad(y)| over output rows r0..r0+nrows-1 (row-masked)."""
            diff = jnp.abs(abs_grad(bx_ref, r0, nrows) - abs_grad(by_ref, r0, nrows))
            rsum = jnp.sum(diff, axis=1, keepdims=True)            # (nrows, 1)
            img = row0 + r0 + lax.broadcasted_iota(jnp.int32, (nrows, 1), 0)
            rsum = jnp.where(jnp.logical_and(img >= 0, img < H), rsum, 0.0)
            return jnp.sum(rsum)

        def fill(buf, src, r0):
            """Channel-sum (in f32) strip rows [r0, r0+_STRIP) into the halo buffer."""
            sc = (src[0, pl.ds(r0, _STRIP), :].astype(f32)
                  + src[1, pl.ds(r0, _STRIP), :].astype(f32)
                  + src[2, pl.ds(r0, _STRIP), :].astype(f32))
            if partial_last:               # rows past the image act as zero padding
                img = t * TH + r0 + lax.broadcasted_iota(jnp.int32, (_STRIP, 1), 0)
                sc = jnp.where(img < H, sc, 0.0)
            buf[pl.ds(r0 + 2, _STRIP), :] = sc

        def body(s, carry):
            r0 = pl.multiple_of(s * _STRIP, _STRIP)
            fill(bx_ref, x_ref, r0)
            fill(by_ref, y_ref, r0)
            return carry + rows_loss(r0, _STRIP)

        tile_sum = lax.fori_loop(0, n_strips, body, jnp.zeros((), f32),
                                 unroll=(n_strips <= 8))
        acc_ref[...] = acc_ref[...] + tile_sum

        @pl.when(t == n_tiles - 1)
        def _finalize():
            if not partial_last:
                # bottom image row: needs the permanent zero-pad row below the tile
                acc_ref[...] = acc_ref[...] + rows_loss(TH, 1)
            o_ref[...] = acc_ref[...]

    return kernel


def _vmem_capacity_bytes():
    try:
        return int(pltpu.get_tpu_info().vmem_capacity_bytes)
    except Exception:
        return 64 * 1024 * 1024            # v7x per-TensorCore floor (safe everywhere)


def _pick_tile_h(H, W, itemsize, vmem_cap):
    """Largest strip-aligned row tile whose double-buffered streamed blocks
    (2 inputs x 2 pipeline buffers x 3 channels, native dtype) plus the two f32
    halo scratches fit ~55% of physical VMEM."""
    budget = int(vmem_cap * 0.55)
    per_row = 2 * 2 * 3 * W * itemsize + 2 * W * 4
    cap = max(_STRIP, (budget // per_row) // _STRIP * _STRIP)
    need = -(-H // _STRIP) * _STRIP        # H rounded up to the strip size
    return min(cap, need)


def grad_loss(x, y, *, tile_h=None):
    """Sobel-gradient L1 loss (PyTorch GradLoss.forward) on NCHW inputs."""
    assert x.shape == y.shape and x.ndim == 4
    B, C, H, W = x.shape
    assert C == 3, "GradLoss conv weights are built for 3 input channels"
    assert H >= 1 and W >= 2

    vmem_cap = _vmem_capacity_bytes()
    itemsize = max(jnp.dtype(x.dtype).itemsize, jnp.dtype(y.dtype).itemsize)
    if tile_h is None:
        TH = _pick_tile_h(H, W, itemsize, vmem_cap)
    else:
        TH = int(tile_h)
        assert TH >= _STRIP and TH % _STRIP == 0, "tile_h must be a multiple of 8"
    n_tiles = pl.cdiv(H, TH)

    kernel = _make_kernel(TH, W, H, n_tiles)

    partial = pl.pallas_call(
        kernel,
        out_shape=jax.ShapeDtypeStruct((B, 1, 1), jnp.float32),
        grid_spec=pltpu.PrefetchScalarGridSpec(
            num_scalar_prefetch=0,
            grid=(B, n_tiles),
            in_specs=[pl.BlockSpec((None, 3, TH, W), lambda b, t: (b, 0, t, 0)),
                      pl.BlockSpec((None, 3, TH, W), lambda b, t: (b, 0, t, 0))],
            out_specs=pl.BlockSpec((None, 1, 1), lambda b, t: (b, 0, 0)),
            scratch_shapes=[
                pltpu.VMEM((TH + 3, W), jnp.float32),   # x halo / carry buffer
                pltpu.VMEM((TH + 3, W), jnp.float32),   # y halo / carry buffer
                pltpu.VMEM((1, 1), jnp.float32),        # per-image running sum
            ],
        ),
        compiler_params=pltpu.CompilerParams(
            dimension_semantics=("parallel", "arbitrary"),
            vmem_limit_bytes=int(vmem_cap * 0.9)),
    )(x, y)

    # nn.L1Loss(): mean over the B*1*H*W conv-output elements.
    return jnp.sum(partial) * (1.0 / float(B * H * W))


def _reference(x, y):
    """Pure-JAX reference matching the PyTorch module (for sanity checks)."""
    kx = jnp.array([[-1., 0., 1.], [-2., 0., 2.], [-1., 0., 1.]], jnp.float32)
    ky = jnp.array([[-1., -2., -1.], [0., 0., 0.], [1., 2., 1.]], jnp.float32)

    def conv1(img, k):          # img: (B, H, W), 'same' zero padding
        p = jnp.pad(img, ((0, 0), (1, 1), (1, 1)))
        H, W = img.shape[1:]
        out = jnp.zeros_like(img)
        for u in range(3):
            for v in range(3):
                out = out + k[u, v] * p[:, u:u + H, v:v + W]
        return out

    xs = jnp.sum(x.astype(jnp.float32), axis=1)
    ys = jnp.sum(y.astype(jnp.float32), axis=1)
    go = jnp.abs(conv1(xs, kx)) + jnp.abs(conv1(xs, ky))
    gl = jnp.abs(conv1(ys, kx)) + jnp.abs(conv1(ys, ky))
    return jnp.mean(jnp.abs(go - gl))


if __name__ == "__main__":
    key = jax.random.PRNGKey(0)
    k1, k2, k3, k4, k5, k6 = jax.random.split(key, 6)

    # small shape consistent with the module (NCHW, 3 channels); auto tile size
    x = jax.random.normal(k1, (2, 3, 16, 16), dtype=jnp.float32)
    y = jax.random.normal(k2, (2, 3, 16, 16), dtype=jnp.float32)
    out = jax.block_until_ready(grad_loss(x, y))
    ref = jax.block_until_ready(_reference(x, y))
    assert jnp.allclose(out, ref, rtol=1e-4, atol=1e-4), (out, ref)

    # multi-tile path: exercises the row carry + accumulator across grid steps
    x2 = jax.random.normal(k3, (2, 3, 32, 128), dtype=jnp.float32)
    y2 = jax.random.normal(k4, (2, 3, 32, 128), dtype=jnp.float32)
    out2 = jax.block_until_ready(grad_loss(x2, y2, tile_h=8))
    ref2 = jax.block_until_ready(_reference(x2, y2))
    assert jnp.allclose(out2, ref2, rtol=1e-4, atol=1e-4), (out2, ref2)

    # non-divisible H (masked partial last tile) + native bf16 streaming
    x3 = jax.random.normal(k5, (2, 3, 20, 128), dtype=jnp.float32).astype(jnp.bfloat16)
    y3 = jax.random.normal(k6, (2, 3, 20, 128), dtype=jnp.float32).astype(jnp.bfloat16)
    out3 = jax.block_until_ready(grad_loss(x3, y3, tile_h=16))
    ref3 = jax.block_until_ready(_reference(x3, y3))
    assert jnp.allclose(out3, ref3, rtol=2e-3, atol=2e-3), (out3, ref3)

    print("KERNEL_OK")
</pallas_src>

<mosaic_0001>
module attributes {stable_mosaic.version = 11 : i64} {
  func.func @kernel(%arg0: i32, %arg1: i32, %arg2: memref<1x3x16x16xf32, #tpu.memory_space<vmem>>, %arg3: memref<1x3x16x16xf32, #tpu.memory_space<vmem>>, %arg4: memref<1x1x1xf32, #tpu.memory_space<vmem>>, %arg5: memref<19x16xf32, #tpu.memory_space<vmem>>, %arg6: memref<19x16xf32, #tpu.memory_space<vmem>>, %arg7: memref<1x1xf32, #tpu.memory_space<vmem>>) attributes {dimension_semantics = [#tpu.dimension_semantics<parallel>, #tpu.dimension_semantics<arbitrary>], iteration_bounds = array<i64: 2, 1>, scalar_prefetch = 0 : i64, scratch_operands = 3 : i64, tpu.core_type = #tpu.core_type<tc>, window_params = [{transform_indices = @transform_0, window_bounds = array<i64: 1, 3, 16, 16>}, {transform_indices = @transform_1, window_bounds = array<i64: 1, 3, 16, 16>}, {transform_indices = @transform_2, window_bounds = array<i64: 1, 1, 1>}]} {
    %c16_i32 = arith.constant 16 : i32
    %0 = arith.muli %arg1, %c16_i32 : i32
    %c1_i32 = arith.constant 1 : i32
    %1 = arith.subi %0, %c1_i32 : i32
    %c0_i32 = arith.constant 0 : i32
    %2 = arith.cmpi eq, %arg1, %c0_i32 : i32
    %3 = arith.extui %2 : i1 to i32
    %c0_i32_0 = arith.constant 0 : i32
    %4 = arith.cmpi ne, %3, %c0_i32_0 : i32
    scf.if %4 {
      %cst_79 = arith.constant 0.000000e+00 : f32
      %215 = vector.broadcast %cst_79 : f32 to vector<2x16xf32>
      %c0_80 = arith.constant 0 : index
      %c0_81 = arith.constant 0 : index
      %216 = vector.load %arg5[%c0_80, %c0_81] : memref<19x16xf32, #tpu.memory_space<vmem>>, vector<2x16xf32>
      tpu.vector_store %arg5[%c0_80, %c0_81], %215 {strides = array<i32>} : memref<19x16xf32, #tpu.memory_space<vmem>>, vector<2x16xf32>,
      %cst_82 = arith.constant 0.000000e+00 : f32
      %217 = vector.broadcast %cst_82 : f32 to vector<2x16xf32>
      %c0_83 = arith.constant 0 : index
      %c0_84 = arith.constant 0 : index
      %218 = vector.load %arg6[%c0_83, %c0_84] : memref<19x16xf32, #tpu.memory_space<vmem>>, vector<2x16xf32>
      tpu.vector_store %arg6[%c0_83, %c0_84], %217 {strides = array<i32>} : memref<19x16xf32, #tpu.memory_space<vmem>>, vector<2x16xf32>,
      %cst_85 = arith.constant 0.000000e+00 : f32
      %219 = vector.broadcast %cst_85 : f32 to vector<1x16xf32>
      %c18 = arith.constant 18 : index
      %c0_86 = arith.constant 0 : index
      %220 = vector.load %arg5[%c18, %c0_86] : memref<19x16xf32, #tpu.memory_space<vmem>>, vector<1x16xf32>
      tpu.vector_store %arg5[%c18, %c0_86], %219 {strides = array<i32>} : memref<19x16xf32, #tpu.memory_space<vmem>>, vector<1x16xf32>,
      %cst_87 = arith.constant 0.000000e+00 : f32
      %221 = vector.broadcast %cst_87 : f32 to vector<1x16xf32>
      %c18_88 = arith.constant 18 : index
      %c0_89 = arith.constant 0 : index
      %222 = vector.load %arg6[%c18_88, %c0_89] : memref<19x16xf32, #tpu.memory_space<vmem>>, vector<1x16xf32>
      tpu.vector_store %arg6[%c18_88, %c0_89], %221 {strides = array<i32>} : memref<19x16xf32, #tpu.memory_space<vmem>>, vector<1x16xf32>,
      %cst_90 = arith.constant 0.000000e+00 : f32
      %223 = vector.broadcast %cst_90 : f32 to vector<1x1xf32>
      %c0_91 = arith.constant 0 : index
      %c0_92 = arith.constant 0 : index
      %224 = vector.load %arg7[%c0_91, %c0_92] : memref<1x1xf32, #tpu.memory_space<vmem>>, vector<1x1xf32>
      tpu.vector_store %arg7[%c0_91, %c0_92], %223 {strides = array<i32>} : memref<1x1xf32, #tpu.memory_space<vmem>>, vector<1x1xf32>,
    } else {
    }
    %c0_i32_1 = arith.constant 0 : i32
    %5 = arith.cmpi sgt, %arg1, %c0_i32_1 : i32
    %6 = arith.extui %5 : i1 to i32
    %c0_i32_2 = arith.constant 0 : i32
    %7 = arith.cmpi ne, %6, %c0_i32_2 : i32
    scf.if %7 {
      %c16 = arith.constant 16 : index
      %c0_79 = arith.constant 0 : index
      %215 = vector.load %arg5[%c16, %c0_79] : memref<19x16xf32, #tpu.memory_space<vmem>>, vector<2x16xf32>
      %c0_80 = arith.constant 0 : index
      %c0_81 = arith.constant 0 : index
      %216 = vector.load %arg5[%c0_80, %c0_81] : memref<19x16xf32, #tpu.memory_space<vmem>>, vector<2x16xf32>
      tpu.vector_store %arg5[%c0_80, %c0_81], %215 {strides = array<i32>} : memref<19x16xf32, #tpu.memory_space<vmem>>, vector<2x16xf32>,
      %c16_82 = arith.constant 16 : index
      %c0_83 = arith.constant 0 : index
      %217 = vector.load %arg6[%c16_82, %c0_83] : memref<19x16xf32, #tpu.memory_space<vmem>>, vector<2x16xf32>
      %c0_84 = arith.constant 0 : index
      %c0_85 = arith.constant 0 : index
      %218 = vector.load %arg6[%c0_84, %c0_85] : memref<19x16xf32, #tpu.memory_space<vmem>>, vector<2x16xf32>
      tpu.vector_store %arg6[%c0_84, %c0_85], %217 {strides = array<i32>} : memref<19x16xf32, #tpu.memory_space<vmem>>, vector<2x16xf32>,
    } else {
    }
    %cst = arith.constant 0.000000e+00 : f32
    %c0_i32_3 = arith.constant 0 : i32
    %c8_i32 = arith.constant 8 : i32
    %8 = arith.muli %c0_i32_3, %c8_i32 : i32
    %9 = tpu.assume_multiple %8, 8 : i32
    %c0 = arith.constant 0 : index
    %c0_4 = arith.constant 0 : index
    %10 = arith.index_cast %9 : i32 to index
    %c0_5 = arith.constant 0 : index
    %11 = vector.load %arg2[%c0, %c0_4, %10, %c0_5] : memref<1x3x16x16xf32, #tpu.memory_space<vmem>>, vector<1x1x8x16xf32>
    %12 = vector.shape_cast %11 : vector<1x1x8x16xf32> to vector<8x16xf32>
    %c0_6 = arith.constant 0 : index
    %c1 = arith.constant 1 : index
    %13 = arith.index_cast %9 : i32 to index
    %c0_7 = arith.constant 0 : index
    %14 = vector.load %arg2[%c0_6, %c1, %13, %c0_7] : memref<1x3x16x16xf32, #tpu.memory_space<vmem>>, vector<1x1x8x16xf32>
    %15 = vector.shape_cast %14 : vector<1x1x8x16xf32> to vector<8x16xf32>
    %16 = arith.addf %12, %15 : vector<8x16xf32>
    %c0_8 = arith.constant 0 : index
    %c2 = arith.constant 2 : index
    %17 = arith.index_cast %9 : i32 to index
    %c0_9 = arith.constant 0 : index
    %18 = vector.load %arg2[%c0_8, %c2, %17, %c0_9] : memref<1x3x16x16xf32, #tpu.memory_space<vmem>>, vector<1x1x8x16xf32>
    %19 = vector.shape_cast %18 : vector<1x1x8x16xf32> to vector<8x16xf32>
    %20 = arith.addf %16, %19 : vector<8x16xf32>
    %c2_i32 = arith.constant 2 : i32
    %21 = arith.addi %9, %c2_i32 : i32
    %22 = arith.index_cast %21 : i32 to index
    %c0_10 = arith.constant 0 : index
    %23 = vector.load %arg5[%22, %c0_10] : memref<19x16xf32, #tpu.memory_space<vmem>>, vector<8x16xf32>
    tpu.vector_store %arg5[%22, %c0_10], %20 {strides = array<i32>} : memref<19x16xf32, #tpu.memory_space<vmem>>, vector<8x16xf32>,
    %c0_11 = arith.constant 0 : index
    %c0_12 = arith.constant 0 : index
    %24 = arith.index_cast %9 : i32 to index
    %c0_13 = arith.constant 0 : index
    %25 = vector.load %arg3[%c0_11, %c0_12, %24, %c0_13] : memref<1x3x16x16xf32, #tpu.memory_space<vmem>>, vector<1x1x8x16xf32>
    %26 = vector.shape_cast %25 : vector<1x1x8x16xf32> to vector<8x16xf32>
    %c0_14 = arith.constant 0 : index
    %c1_15 = arith.constant 1 : index
    %27 = arith.index_cast %9 : i32 to index
    %c0_16 = arith.constant 0 : index
    %28 = vector.load %arg3[%c0_14, %c1_15, %27, %c0_16] : memref<1x3x16x16xf32, #tpu.memory_space<vmem>>, vector<1x1x8x16xf32>
    %29 = vector.shape_cast %28 : vector<1x1x8x16xf32> to vector<8x16xf32>
    %30 = arith.addf %26, %29 : vector<8x16xf32>
    %c0_17 = arith.constant 0 : index
    %c2_18 = arith.constant 2 : index
    %31 = arith.index_cast %9 : i32 to index
    %c0_19 = arith.constant 0 : index
    %32 = vector.load %arg3[%c0_17, %c2_18, %31, %c0_19] : memref<1x3x16x16xf32, #tpu.memory_space<vmem>>, vector<1x1x8x16xf32>
    %33 = vector.shape_cast %32 : vector<1x1x8x16xf32> to vector<8x16xf32>
    %34 = arith.addf %30, %33 : vector<8x16xf32>
    %c2_i32_20 = arith.constant 2 : i32
    %35 = arith.addi %9, %c2_i32_20 : i32
    %36 = arith.index_cast %35 : i32 to index
    %c0_21 = arith.constant 0 : index
    %37 = vector.load %arg6[%36, %c0_21] : memref<19x16xf32, #tpu.memory_space<vmem>>, vector<8x16xf32>
    tpu.vector_store %arg6[%36, %c0_21], %34 {strides = array<i32>} : memref<19x16xf32, #tpu.memory_space<vmem>>, vector<8x16xf32>,
    %38 = arith.index_cast %9 : i32 to index
    %c0_22 = arith.constant 0 : index
    %39 = vector.load %arg5[%38, %c0_22] : memref<19x16xf32, #tpu.memory_space<vmem>>, vector<10x16xf32>
    %cst_23 = arith.constant 0.000000e+00 : f32
    %40 = vector.broadcast %cst_23 : f32 to vector<10x1xf32>
    %41 = vector.extract_strided_slice %39 {offsets = [0, 0], sizes = [10, 15], strides = [1, 1]} : vector<10x16xf32> to vector<10x15xf32>
    %42 = tpu.concatenate %40, %41 in 1 : vector<10x1xf32>, vector<10x15xf32> -> vector<10x16xf32>
    %43 = vector.extract_strided_slice %39 {offsets = [0, 1], sizes = [10, 15], strides = [1, 1]} : vector<10x16xf32> to vector<10x15xf32>
    %44 = tpu.concatenate %43, %40 in 1 : vector<10x15xf32>, vector<10x1xf32> -> vector<10x16xf32>
    %45 = arith.subf %44, %42 : vector<10x16xf32>
    %cst_24 = arith.constant 2.000000e+00 : f32
    %46 = vector.broadcast %cst_24 : f32 to vector<10x16xf32>
    %47 = arith.mulf %46, %39 : vector<10x16xf32>
    %48 = arith.addf %42, %47 : vector<10x16xf32>
    %49 = arith.addf %48, %44 : vector<10x16xf32>
    %50 = vector.extract_strided_slice %45 {offsets = [0, 0], sizes = [8, 16], strides = [1, 1]} : vector<10x16xf32> to vector<8x16xf32>
    %51 = vector.extract_strided_slice %45 {offsets = [1, 0], sizes = [8, 16], strides = [1, 1]} : vector<10x16xf32> to vector<8x16xf32>
    %cst_25 = arith.constant 2.000000e+00 : f32
    %52 = vector.broadcast %cst_25 : f32 to vector<8x16xf32>
    %53 = arith.mulf %52, %51 : vector<8x16xf32>
    %54 = arith.addf %50, %53 : vector<8x16xf32>
    %55 = vector.extract_strided_slice %45 {offsets = [2, 0], sizes = [8, 16], strides = [1, 1]} : vector<10x16xf32> to vector<8x16xf32>
    %56 = arith.addf %54, %55 : vector<8x16xf32>
    %57 = vector.extract_strided_slice %49 {offsets = [2, 0], sizes = [8, 16], strides = [1, 1]} : vector<10x16xf32> to vector<8x16xf32>
    %58 = vector.extract_strided_slice %49 {offsets = [0, 0], sizes = [8, 16], strides = [1, 1]} : vector<10x16xf32> to vector<8x16xf32>
    %59 = arith.subf %57, %58 : vector<8x16xf32>
    %60 = math.absf %56 : vector<8x16xf32>
    %61 = math.absf %59 : vector<8x16xf32>
    %62 = arith.addf %60, %61 : vector<8x16xf32>
    %63 = arith.index_cast %9 : i32 to index
    %c0_26 = arith.constant 0 : index
    %64 = vector.load %arg6[%63, %c0_26] : memref<19x16xf32, #tpu.memory_space<vmem>>, vector<10x16xf32>
    %cst_27 = arith.constant 0.000000e+00 : f32
    %65 = vector.broadcast %cst_27 : f32 to vector<10x1xf32>
    %66 = vector.extract_strided_slice %64 {offsets = [0, 0], sizes = [10, 15], strides = [1, 1]} : vector<10x16xf32> to vector<10x15xf32>
    %67 = tpu.concatenate %65, %66 in 1 : vector<10x1xf32>, vector<10x15xf32> -> vector<10x16xf32>
    %68 = vector.extract_strided_slice %64 {offsets = [0, 1], sizes = [10, 15], strides = [1, 1]} : vector<10x16xf32> to vector<10x15xf32>
    %69 = tpu.concatenate %68, %65 in 1 : vector<10x15xf32>, vector<10x1xf32> -> vector<10x16xf32>
    %70 = arith.subf %69, %67 : vector<10x16xf32>
    %cst_28 = arith.constant 2.000000e+00 : f32
    %71 = vector.broadcast %cst_28 : f32 to vector<10x16xf32>
    %72 = arith.mulf %71, %64 : vector<10x16xf32>
    %73 = arith.addf %67, %72 : vector<10x16xf32>
    %74 = arith.addf %73, %69 : vector<10x16xf32>
    %75 = vector.extract_strided_slice %70 {offsets = [0, 0], sizes = [8, 16], strides = [1, 1]} : vector<10x16xf32> to vector<8x16xf32>
    %76 = vector.extract_strided_slice %70 {offsets = [1, 0], sizes = [8, 16], strides = [1, 1]} : vector<10x16xf32> to vector<8x16xf32>
    %cst_29 = arith.constant 2.000000e+00 : f32
    %77 = vector.broadcast %cst_29 : f32 to vector<8x16xf32>
    %78 = arith.mulf %77, %76 : vector<8x16xf32>
    %79 = arith.addf %75, %78 : vector<8x16xf32>
    %80 = vector.extract_strided_slice %70 {offsets = [2, 0], sizes = [8, 16], strides = [1, 1]} : vector<10x16xf32> to vector<8x16xf32>
    %81 = arith.addf %79, %80 : vector<8x16xf32>
    %82 = vector.extract_strided_slice %74 {offsets = [2, 0], sizes = [8, 16], strides = [1, 1]} : vector<10x16xf32> to vector<8x16xf32>
    %83 = vector.extract_strided_slice %74 {offsets = [0, 0], sizes = [8, 16], strides = [1, 1]} : vector<10x16xf32> to vector<8x16xf32>
    %84 = arith.subf %82, %83 : vector<8x16xf32>
    %85 = math.absf %81 : vector<8x16xf32>
    %86 = math.absf %84 : vector<8x16xf32>
    %87 = arith.addf %85, %86 : vector<8x16xf32>
    %88 = arith.subf %62, %87 : vector<8x16xf32>
    %89 = math.absf %88 : vector<8x16xf32>
    %cst_30 = arith.constant dense<0.000000e+00> : vector<8xf32>
    %90 = vector.multi_reduction <add>, %89, %cst_30 [1] : vector<8x16xf32> to vector<8xf32>
    %91 = vector.shape_cast %90 : vector<8xf32> to vector<8x1xf32>
    %92 = arith.addi %1, %9 : i32
    %93 = tpu.iota {dimensions = array<i32: 0>} : vector<8x1xi32>
    %94 = vector.broadcast %92 : i32 to vector<8x1xi32>
    %95 = arith.addi %94, %93 : vector<8x1xi32>
    %c0_i32_31 = arith.constant 0 : i32
    %96 = vector.broadcast %c0_i32_31 : i32 to vector<8x1xi32>
    %97 = arith.cmpi sge, %95, %96 : vector<8x1xi32>
    %c16_i32_32 = arith.constant 16 : i32
    %98 = vector.broadcast %c16_i32_32 : i32 to vector<8x1xi32>
    %99 = arith.cmpi slt, %95, %98 : vector<8x1xi32>
    %100 = arith.andi %97, %99 : vector<8x1xi1>
    %cst_33 = arith.constant 0.000000e+00 : f32
    %101 = vector.broadcast %cst_33 : f32 to vector<8x1xf32>
    %102 = arith.select %100, %91, %101 : vector<8x1xi1>, vector<8x1xf32>
    %103 = vector.shape_cast %102 : vector<8x1xf32> to vector<1x8x1xf32>
    %cst_34 = arith.constant dense<0.000000e+00> : vector<1xf32>
    %104 = vector.multi_reduction <add>, %103, %cst_34 [1, 2] : vector<1x8x1xf32> to vector<1xf32>
    %105 = vector.shape_cast %104 : vector<1xf32> to vector<1x1x1xf32>
    %106 = vector.extract %105[0, 0, 0] : f32 from vector<1x1x1xf32>
    %107 = arith.addf %cst, %106 : f32
    %c1_i32_35 = arith.constant 1 : i32
    %c8_i32_36 = arith.constant 8 : i32
    %108 = arith.muli %c1_i32_35, %c8_i32_36 : i32
    %109 = tpu.assume_multiple %108, 8 : i32
    %c0_37 = arith.constant 0 : index
    %c0_38 = arith.constant 0 : index
    %110 = arith.index_cast %109 : i32 to index
    %c0_39 = arith.constant 0 : index
    %111 = vector.load %arg2[%c0_37, %c0_38, %110, %c0_39] : memref<1x3x16x16xf32, #tpu.memory_space<vmem>>, vector<1x1x8x16xf32>
    %112 = vector.shape_cast %111 : vector<1x1x8x16xf32> to vector<8x16xf32>
    %c0_40 = arith.constant 0 : index
    %c1_41 = arith.constant 1 : index
    %113 = arith.index_cast %109 : i32 to index
    %c0_42 = arith.constant 0 : index
    %114 = vector.load %arg2[%c0_40, %c1_41, %113, %c0_42] : memref<1x3x16x16xf32, #tpu.memory_space<vmem>>, vector<1x1x8x16xf32>
    %115 = vector.shape_cast %114 : vector<1x1x8x16xf32> to vector<8x16xf32>
    %116 = arith.addf %112, %115 : vector<8x16xf32>
    %c0_43 = arith.constant 0 : index
    %c2_44 = arith.constant 2 : index
    %117 = arith.index_cast %109 : i32 to index
    %c0_45 = arith.constant 0 : index
    %118 = vector.load %arg2[%c0_43, %c2_44, %117, %c0_45] : memref<1x3x16x16xf32, #tpu.memory_space<vmem>>, vector<1x1x8x16xf32>
    %119 = vector.shape_cast %118 : vector<1x1x8x16xf32> to vector<8x16xf32>
    %120 = arith.addf %116, %119 : vector<8x16xf32>
    %c2_i32_46 = arith.constant 2 : i32
    %121 = arith.addi %109, %c2_i32_46 : i32
    %122 = arith.index_cast %121 : i32 to index
    %c0_47 = arith.constant 0 : index
    %123 = vector.load %arg5[%122, %c0_47] : memref<19x16xf32, #tpu.memory_space<vmem>>, vector<8x16xf32>
    tpu.vector_store %arg5[%122, %c0_47], %120 {strides = array<i32>} : memref<19x16xf32, #tpu.memory_space<vmem>>, vector<8x16xf32>,
    %c0_48 = arith.constant 0 : index
    %c0_49 = arith.constant 0 : index
    %124 = arith.index_cast %109 : i32 to index
    %c0_50 = arith.constant 0 : index
    %125 = vector.load %arg3[%c0_48, %c0_49, %124, %c0_50] : memref<1x3x16x16xf32, #tpu.memory_space<vmem>>, vector<1x1x8x16xf32>
    %126 = vector.shape_cast %125 : vector<1x1x8x16xf32> to vector<8x16xf32>
    %c0_51 = arith.constant 0 : index
    %c1_52 = arith.constant 1 : index
    %127 = arith.index_cast %109 : i32 to index
    %c0_53 = arith.constant 0 : index
    %128 = vector.load %arg3[%c0_51, %c1_52, %127, %c0_53] : memref<1x3x16x16xf32, #tpu.memory_space<vmem>>, vector<1x1x8x16xf32>
    %129 = vector.shape_cast %128 : vector<1x1x8x16xf32> to vector<8x16xf32>
    %130 = arith.addf %126, %129 : vector<8x16xf32>
    %c0_54 = arith.constant 0 : index
    %c2_55 = arith.constant 2 : index
    %131 = arith.index_cast %109 : i32 to index
    %c0_56 = arith.constant 0 : index
    %132 = vector.load %arg3[%c0_54, %c2_55, %131, %c0_56] : memref<1x3x16x16xf32, #tpu.memory_space<vmem>>, vector<1x1x8x16xf32>
    %133 = vector.shape_cast %132 : vector<1x1x8x16xf32> to vector<8x16xf32>
    %134 = arith.addf %130, %133 : vector<8x16xf32>
    %c2_i32_57 = arith.constant 2 : i32
    %135 = arith.addi %109, %c2_i32_57 : i32
    %136 = arith.index_cast %135 : i32 to index
    %c0_58 = arith.constant 0 : index
    %137 = vector.load %arg6[%136, %c0_58] : memref<19x16xf32, #tpu.memory_space<vmem>>, vector<8x16xf32>
    tpu.vector_store %arg6[%136, %c0_58], %134 {strides = array<i32>} : memref<19x16xf32, #tpu.memory_space<vmem>>, vector<8x16xf32>,
    %138 = arith.index_cast %109 : i32 to index
    %c0_59 = arith.constant 0 : index
    %139 = vector.load %arg5[%138, %c0_59] : memref<19x16xf32, #tpu.memory_space<vmem>>, vector<10x16xf32>
    %cst_60 = arith.constant 0.000000e+00 : f32
    %140 = vector.broadcast %cst_60 : f32 to vector<10x1xf32>
    %141 = vector.extract_strided_slice %139 {offsets = [0, 0], sizes = [10, 15], strides = [1, 1]} : vector<10x16xf32> to vector<10x15xf32>
    %142 = tpu.concatenate %140, %141 in 1 : vector<10x1xf32>, vector<10x15xf32> -> vector<10x16xf32>
    %143 = vector.extract_strided_slice %139 {offsets = [0, 1], sizes = [10, 15], strides = [1, 1]} : vector<10x16xf32> to vector<10x15xf32>
    %144 = tpu.concatenate %143, %140 in 1 : vector<10x15xf32>, vector<10x1xf32> -> vector<10x16xf32>
    %145 = arith.subf %144, %142 : vector<10x16xf32>
    %cst_61 = arith.constant 2.000000e+00 : f32
    %146 = vector.broadcast %cst_61 : f32 to vector<10x16xf32>
    %147 = arith.mulf %146, %139 : vector<10x16xf32>
    %148 = arith.addf %142, %147 : vector<10x16xf32>
    %149 = arith.addf %148, %144 : vector<10x16xf32>
    %150 = vector.extract_strided_slice %145 {offsets = [0, 0], sizes = [8, 16], strides = [1, 1]} : vector<10x16xf32> to vector<8x16xf32>
    %151 = vector.extract_strided_slice %145 {offsets = [1, 0], sizes = [8, 16], strides = [1, 1]} : vector<10x16xf32> to vector<8x16xf32>
    %cst_62 = arith.constant 2.000000e+00 : f32
    %152 = vector.broadcast %cst_62 : f32 to vector<8x16xf32>
    %153 = arith.mulf %152, %151 : vector<8x16xf32>
    %154 = arith.addf %150, %153 : vector<8x16xf32>
    %155 = vector.extract_strided_slice %145 {offsets = [2, 0], sizes = [8, 16], strides = [1, 1]} : vector<10x16xf32> to vector<8x16xf32>
    %156 = arith.addf %154, %155 : vector<8x16xf32>
    %157 = vector.extract_strided_slice %149 {offsets = [2, 0], sizes = [8, 16], strides = [1, 1]} : vector<10x16xf32> to vector<8x16xf32>
    %158 = vector.extract_strided_slice %149 {offsets = [0, 0], sizes = [8, 16], strides = [1, 1]} : vector<10x16xf32> to vector<8x16xf32>
    %159 = arith.subf %157, %158 : vector<8x16xf32>
    %160 = math.absf %156 : vector<8x16xf32>
    %161 = math.absf %159 : vector<8x16xf32>
    %162 = arith.addf %160, %161 : vector<8x16xf32>
    %163 = arith.index_cast %109 : i32 to index
    %c0_63 = arith.constant 0 : index
    %164 = vector.load %arg6[%163, %c0_63] : memref<19x16xf32, #tpu.memory_space<vmem>>, vector<10x16xf32>
    %cst_64 = arith.constant 0.000000e+00 : f32
    %165 = vector.broadcast %cst_64 : f32 to vector<10x1xf32>
    %166 = vector.extract_strided_slice %164 {offsets = [0, 0], sizes = [10, 15], strides = [1, 1]} : vector<10x16xf32> to vector<10x15xf32>
    %167 = tpu.concatenate %165, %166 in 1 : vector<10x1xf32>, vector<10x15xf32> -> vector<10x16xf32>
    %168 = vector.extract_strided_slice %164 {offsets = [0, 1], sizes = [10, 15], strides = [1, 1]} : vector<10x16xf32> to vector<10x15xf32>
    %169 = tpu.concatenate %168, %165 in 1 : vector<10x15xf32>, vector<10x1xf32> -> vector<10x16xf32>
    %170 = arith.subf %169, %167 : vector<10x16xf32>
    %cst_65 = arith.constant 2.000000e+00 : f32
    %171 = vector.broadcast %cst_65 : f32 to vector<10x16xf32>
    %172 = arith.mulf %171, %164 : vector<10x16xf32>
    %173 = arith.addf %167, %172 : vector<10x16xf32>
    %174 = arith.addf %173, %169 : vector<10x16xf32>
    %175 = vector.extract_strided_slice %170 {offsets = [0, 0], sizes = [8, 16], strides = [1, 1]} : vector<10x16xf32> to vector<8x16xf32>
    %176 = vector.extract_strided_slice %170 {offsets = [1, 0], sizes = [8, 16], strides = [1, 1]} : vector<10x16xf32> to vector<8x16xf32>
    %cst_66 = arith.constant 2.000000e+00 : f32
    %177 = vector.broadcast %cst_66 : f32 to vector<8x16xf32>
    %178 = arith.mulf %177, %176 : vector<8x16xf32>
    %179 = arith.addf %175, %178 : vector<8x16xf32>
    %180 = vector.extract_strided_slice %170 {offsets = [2, 0], sizes = [8, 16], strides = [1, 1]} : vector<10x16xf32> to vector<8x16xf32>
    %181 = arith.addf %179, %180 : vector<8x16xf32>
    %182 = vector.extract_strided_slice %174 {offsets = [2, 0], sizes = [8, 16], strides = [1, 1]} : vector<10x16xf32> to vector<8x16xf32>
    %183 = vector.extract_strided_slice %174 {offsets = [0, 0], sizes = [8, 16], strides = [1, 1]} : vector<10x16xf32> to vector<8x16xf32>
    %184 = arith.subf %182, %183 : vector<8x16xf32>
    %185 = math.absf %181 : vector<8x16xf32>
    %186 = math.absf %184 : vector<8x16xf32>
    %187 = arith.addf %185, %186 : vector<8x16xf32>
    %188 = arith.subf %162, %187 : vector<8x16xf32>
    %189 = math.absf %188 : vector<8x16xf32>
    %cst_67 = arith.constant dense<0.000000e+00> : vector<8xf32>
    %190 = vector.multi_reduction <add>, %189, %cst_67 [1] : vector<8x16xf32> to vector<8xf32>
    %191 = vector.shape_cast %190 : vector<8xf32> to vector<8x1xf32>
    %192 = arith.addi %1, %109 : i32
    %193 = tpu.iota {dimensions = array<i32: 0>} : vector<8x1xi32>
    %194 = vector.broadcast %192 : i32 to vector<8x1xi32>
    %195 = arith.addi %194, %193 : vector<8x1xi32>
    %c0_i32_68 = arith.constant 0 : i32
    %196 = vector.broadcast %c0_i32_68 : i32 to vector<8x1xi32>
    %197 = arith.cmpi sge, %195, %196 : vector<8x1xi32>
    %c16_i32_69 = arith.constant 16 : i32
    %198 = vector.broadcast %c16_i32_69 : i32 to vector<8x1xi32>
    %199 = arith.cmpi slt, %195, %198 : vector<8x1xi32>
    %200 = arith.andi %197, %199 : vector<8x1xi1>
    %cst_70 = arith.constant 0.000000e+00 : f32
    %201 = vector.broadcast %cst_70 : f32 to vector<8x1xf32>
    %202 = arith.select %200, %191, %201 : vector<8x1xi1>, vector<8x1xf32>
    %203 = vector.shape_cast %202 : vector<8x1xf32> to vector<1x8x1xf32>
    %cst_71 = arith.constant dense<0.000000e+00> : vector<1xf32>
    %204 = vector.multi_reduction <add>, %203, %cst_71 [1, 2] : vector<1x8x1xf32> to vector<1xf32>
    %205 = vector.shape_cast %204 : vector<1xf32> to vector<1x1x1xf32>
    %206 = vector.extract %205[0, 0, 0] : f32 from vector<1x1x1xf32>
    %207 = arith.addf %107, %206 : f32
    %c2_i32_72 = arith.constant 2 : i32
    %c0_73 = arith.constant 0 : index
    %c0_74 = arith.constant 0 : index
    %208 = vector.load %arg7[%c0_73, %c0_74] : memref<1x1xf32, #tpu.memory_space<vmem>>, vector<1x1xf32>
    %209 = vector.broadcast %207 : f32 to vector<1x1xf32>
    %210 = arith.addf %208, %209 : vector<1x1xf32>
    %c0_75 = arith.constant 0 : index
    %c0_76 = arith.constant 0 : index
    %211 = vector.load %arg7[%c0_75, %c0_76] : memref<1x1xf32, #tpu.memory_space<vmem>>, vector<1x1xf32>
    tpu.vector_store %arg7[%c0_75, %c0_76], %210 {strides = array<i32>} : memref<1x1xf32, #tpu.memory_space<vmem>>, vector<1x1xf32>,
    %c0_i32_77 = arith.constant 0 : i32
    %212 = arith.cmpi eq, %arg1, %c0_i32_77 : i32
    %213 = arith.extui %212 : i1 to i32
    %c0_i32_78 = arith.constant 0 : i32
    %214 = arith.cmpi ne, %213, %c0_i32_78 : i32
    scf.if %214 {
      %c0_79 = arith.constant 0 : index
      %c0_80 = arith.constant 0 : index
      %215 = vector.load %arg7[%c0_79, %c0_80] : memref<1x1xf32, #tpu.memory_space<vmem>>, vector<1x1xf32>
      %c16 = arith.constant 16 : index
      %c0_81 = arith.constant 0 : index
      %216 = vector.load %arg5[%c16, %c0_81] : memref<19x16xf32, #tpu.memory_space<vmem>>, vector<3x16xf32>
      %cst_82 = arith.constant 0.000000e+00 : f32
      %217 = vector.broadcast %cst_82 : f32 to vector<3x1xf32>
      %218 = vector.extract_strided_slice %216 {offsets = [0, 0], sizes = [3, 15], strides = [1, 1]} : vector<3x16xf32> to vector<3x15xf32>
      %219 = tpu.concatenate %217, %218 in 1 : vector<3x1xf32>, vector<3x15xf32> -> vector<3x16xf32>
      %220 = vector.extract_strided_slice %216 {offsets = [0, 1], sizes = [3, 15], strides = [1, 1]} : vector<3x16xf32> to vector<3x15xf32>
      %221 = tpu.concatenate %220, %217 in 1 : vector<3x15xf32>, vector<3x1xf32> -> vector<3x16xf32>
      %222 = arith.subf %221, %219 : vector<3x16xf32>
      %cst_83 = arith.constant 2.000000e+00 : f32
      %223 = vector.broadcast %cst_83 : f32 to vector<3x16xf32>
      %224 = arith.mulf %223, %216 : vector<3x16xf32>
      %225 = arith.addf %219, %224 : vector<3x16xf32>
      %226 = arith.addf %225, %221 : vector<3x16xf32>
      %227 = vector.extract_strided_slice %222 {offsets = [0, 0], sizes = [1, 16], strides = [1, 1]} : vector<3x16xf32> to vector<1x16xf32>
      %228 = vector.extract_strided_slice %222 {offsets = [1, 0], sizes = [1, 16], strides = [1, 1]} : vector<3x16xf32> to vector<1x16xf32>
      %cst_84 = arith.constant 2.000000e+00 : f32
      %229 = vector.broadcast %cst_84 : f32 to vector<1x16xf32>
      %230 = arith.mulf %229, %228 : vector<1x16xf32>
      %231 = arith.addf %227, %230 : vector<1x16xf32>
      %232 = vector.extract_strided_slice %222 {offsets = [2, 0], sizes = [1, 16], strides = [1, 1]} : vector<3x16xf32> to vector<1x16xf32>
      %233 = arith.addf %231, %232 : vector<1x16xf32>
      %234 = vector.extract_strided_slice %226 {offsets = [2, 0], sizes = [1, 16], strides = [1, 1]} : vector<3x16xf32> to vector<1x16xf32>
      %235 = vector.extract_strided_slice %226 {offsets = [0, 0], sizes = [1, 16], strides = [1, 1]} : vector<3x16xf32> to vector<1x16xf32>
      %236 = arith.subf %234, %235 : vector<1x16xf32>
      %237 = math.absf %233 : vector<1x16xf32>
      %238 = math.absf %236 : vector<1x16xf32>
      %239 = arith.addf %237, %238 : vector<1x16xf32>
      %c16_85 = arith.constant 16 : index
      %c0_86 = arith.constant 0 : index
      %240 = vector.load %arg6[%c16_85, %c0_86] : memref<19x16xf32, #tpu.memory_space<vmem>>, vector<3x16xf32>
      %cst_87 = arith.constant 0.000000e+00 : f32
      %241 = vector.broadcast %cst_87 : f32 to vector<3x1xf32>
      %242 = vector.extract_strided_slice %240 {offsets = [0, 0], sizes = [3, 15], strides = [1, 1]} : vector<3x16xf32> to vector<3x15xf32>
      %243 = tpu.concatenate %241, %242 in 1 : vector<3x1xf32>, vector<3x15xf32> -> vector<3x16xf32>
      %244 = vector.extract_strided_slice %240 {offsets = [0, 1], sizes = [3, 15], strides = [1, 1]} : vector<3x16xf32> to vector<3x15xf32>
      %245 = tpu.concatenate %244, %241 in 1 : vector<3x15xf32>, vector<3x1xf32> -> vector<3x16xf32>
      %246 = arith.subf %245, %243 : vector<3x16xf32>
      %cst_88 = arith.constant 2.000000e+00 : f32
      %247 = vector.broadcast %cst_88 : f32 to vector<3x16xf32>
      %248 = arith.mulf %247, %240 : vector<3x16xf32>
      %249 = arith.addf %243, %248 : vector<3x16xf32>
      %250 = arith.addf %249, %245 : vector<3x16xf32>
      %251 = vector.extract_strided_slice %246 {offsets = [0, 0], sizes = [1, 16], strides = [1, 1]} : vector<3x16xf32> to vector<1x16xf32>
      %252 = vector.extract_strided_slice %246 {offsets = [1, 0], sizes = [1, 16], strides = [1, 1]} : vector<3x16xf32> to vector<1x16xf32>
      %cst_89 = arith.constant 2.000000e+00 : f32
      %253 = vector.broadcast %cst_89 : f32 to vector<1x16xf32>
      %254 = arith.mulf %253, %252 : vector<1x16xf32>
      %255 = arith.addf %251, %254 : vector<1x16xf32>
      %256 = vector.extract_strided_slice %246 {offsets = [2, 0], sizes = [1, 16], strides = [1, 1]} : vector<3x16xf32> to vector<1x16xf32>
      %257 = arith.addf %255, %256 : vector<1x16xf32>
      %258 = vector.extract_strided_slice %250 {offsets = [2, 0], sizes = [1, 16], strides = [1, 1]} : vector<3x16xf32> to vector<1x16xf32>
      %259 = vector.extract_strided_slice %250 {offsets = [0, 0], sizes = [1, 16], strides = [1, 1]} : vector<3x16xf32> to vector<1x16xf32>
      %260 = arith.subf %258, %259 : vector<1x16xf32>
      %261 = math.absf %257 : vector<1x16xf32>
      %262 = math.absf %260 : vector<1x16xf32>
      %263 = arith.addf %261, %262 : vector<1x16xf32>
      %264 = arith.subf %239, %263 : vector<1x16xf32>
      %265 = math.absf %264 : vector<1x16xf32>
      %cst_90 = arith.constant dense<0.000000e+00> : vector<1xf32>
      %266 = vector.multi_reduction <add>, %265, %cst_90 [1] : vector<1x16xf32> to vector<1xf32>
      %267 = vector.shape_cast %266 : vector<1xf32> to vector<1x1xf32>
      %c16_i32_91 = arith.constant 16 : i32
      %268 = arith.addi %1, %c16_i32_91 : i32
      %269 = tpu.iota {dimensions = array<i32: 0>} : vector<1x1xi32>
      %270 = vector.broadcast %268 : i32 to vector<1x1xi32>
      %271 = arith.addi %270, %269 : vector<1x1xi32>
      %c0_i32_92 = arith.constant 0 : i32
      %272 = vector.broadcast %c0_i32_92 : i32 to vector<1x1xi32>
      %273 = arith.cmpi sge, %271, %272 : vector<1x1xi32>
      %c16_i32_93 = arith.constant 16 : i32
      %274 = vector.broadcast %c16_i32_93 : i32 to vector<1x1xi32>
      %275 = arith.cmpi slt, %271, %274 : vector<1x1xi32>
      %276 = arith.andi %273, %275 : vector<1x1xi1>
      %cst_94 = arith.constant 0.000000e+00 : f32
      %277 = vector.broadcast %cst_94 : f32 to vector<1x1xf32>
      %278 = arith.select %276, %267, %277 : vector<1x1xi1>, vector<1x1xf32>
      %279 = vector.shape_cast %278 : vector<1x1xf32> to vector<1x1x1xf32>
      %cst_95 = arith.constant dense<0.000000e+00> : vector<1xf32>
      %280 = vector.multi_reduction <add>, %279, %cst_95 [1, 2] : vector<1x1x1xf32> to vector<1xf32>
      %281 = vector.shape_cast %280 : vector<1xf32> to vector<1x1x1xf32>
      %282 = vector.extract %281[0, 0, 0] : f32 from vector<1x1x1xf32>
      %283 = vector.broadcast %282 : f32 to vector<1x1xf32>
      %284 = arith.addf %215, %283 : vector<1x1xf32>
      %c0_96 = arith.constant 0 : index
      %c0_97 = arith.constant 0 : index
      %285 = vector.load %arg7[%c0_96, %c0_97] : memref<1x1xf32, #tpu.memory_space<vmem>>, vector<1x1xf32>
      tpu.vector_store %arg7[%c0_96, %c0_97], %284 {strides = array<i32>} : memref<1x1xf32, #tpu.memory_space<vmem>>, vector<1x1xf32>,
      %c0_98 = arith.constant 0 : index
      %c0_99 = arith.constant 0 : index
      %286 = vector.load %arg7[%c0_98, %c0_99] : memref<1x1xf32, #tpu.memory_space<vmem>>, vector<1x1xf32>
      %c0_100 = arith.constant 0 : index
      %c0_101 = arith.constant 0 : index
      %c0_102 = arith.constant 0 : index
      %287 = vector.load %arg4[%c0_100, %c0_101, %c0_102] : memref<1x1x1xf32, #tpu.memory_space<vmem>>, vector<1x1x1xf32>
      %288 = vector.shape_cast %287 : vector<1x1x1xf32> to vector<1x1xf32>
      %289 = vector.shape_cast %286 : vector<1x1xf32> to vector<1x1x1xf32>
      tpu.vector_store %arg4[%c0_100, %c0_101, %c0_102], %289 {strides = array<i32>} : memref<1x1x1xf32, #tpu.memory_space<vmem>>, vector<1x1x1xf32>,
    } else {
    }
    return
  }
  func.func @transform_0(%arg0: i32, %arg1: i32) -> (i32, i32, i32, i32) {
    %c0_i32 = arith.constant 0 : i32
    %c0_i32_0 = arith.constant 0 : i32
    %c0_i32_1 = arith.constant 0 : i32
    return %arg0, %c0_i32, %arg1, %c0_i32_0 : i32, i32, i32, i32
  }
  func.func @transform_1(%arg0: i32, %arg1: i32) -> (i32, i32, i32, i32) {
    %c0_i32 = arith.constant 0 : i32
    %c0_i32_0 = arith.constant 0 : i32
    %c0_i32_1 = arith.constant 0 : i32
    return %arg0, %c0_i32, %arg1, %c0_i32_0 : i32, i32, i32, i32
  }
  func.func @transform_2(%arg0: i32, %arg1: i32) -> (i32, i32, i32) {
    %c0_i32 = arith.constant 0 : i32
    %c0_i32_0 = arith.constant 0 : i32
    %c0_i32_1 = arith.constant 0 : i32
    return %arg0, %c0_i32, %c0_i32_0 : i32, i32, i32
  }
}

</mosaic_0001>

<llo_original>
// kernel: tpu_custom_call.1
$region0: #{tpu_custom_call.1}
  #allocation0 [shape = 'u32[]', space=smem, size = 0x4, offset = 0x4, fixed_abs, tag = 'smem constant byte address 0x4 - core index']
  #allocation1 [shape = 'u32[144,128]{1,0:T(1,128)}', space=vmem, size = 0x12000, scoped, tag = 'internal scratch']
  #allocation2 [shape = 'f32[19,16]{1,0:T(8,128)}', space=vmem, size = 0x3000, scoped, tag = 'scratch operand']
  #allocation3 [shape = 'f32[19,16]{1,0:T(8,128)}', space=vmem, size = 0x3000, scoped, tag = 'scratch operand']
  #allocation4 [shape = 'f32[1,1]{1,0:T(1,128)}', space=vmem, size = 0x200, scoped, tag = 'scratch operand']
  %s0 = inlined_call_operand.hbm [shape: f32[2,3,16,16], index: 0, kind: input, shape index: {}]
  %s1 = inlined_call_operand.hbm [shape: f32[2,3,16,16], index: 1, kind: input, shape index: {}]
  %s2 = inlined_call_operand.vmem [shape: f32[2,1,1], index: 2, kind: output, shape index: {}]
  %s3 = sld [smem:[#allocation0]]
  $region61: #{tpu_custom_call.1} parent=0
    _
  %s5 = ssub.s32 1, %s3
  %s6 = scalar_select 0, %s5, %s3
  $region1: #{tpu_custom_call.1} parent=0
    #allocation5 [shape = 'u8[49152]{0}', space=vmem, size = 0xc000, scoped, tag = 'input window, operand 0']
    #allocation6 [shape = 's32[2]{0}', space=sflag, size = 0x8, scoped, tag = 'scoped memory for tpu_custom_call.1']
    #allocation7 [shape = 'u8[49152]{0}', space=vmem, size = 0xc000, scoped, tag = 'input window, operand 1']
    #allocation8 [shape = 's32[2]{0}', space=sflag, size = 0x8, scoped, tag = 'scoped memory for tpu_custom_call.1']
    %7 = vsyncpa [#allocation6], 0
    %s8 = scalar_lea.sflag [#allocation6], 1
    %9 = vsyncpa %s8, 0
    %10 = vsyncpa [#allocation8], 0
    %s11 = scalar_lea.sflag [#allocation8], 1
    %12 = vsyncpa %s11, 0
    loop: start=0, step=1, limit=4
    $region2: #{tpu_custom_call.1} parent=1 // loop_pre_header
      _
    $region3: #{tpu_custom_call.1} parent=1 // loop_header
      %s14 = sphi 0, %s18
      %p15 = scmp.ge.s32.totalorder %s14, 4
      %s21 = sphi 0, %s33
      %s22 = sphi 0, %s29
      %s23 = sphi 0, %s21
      %s24 = sphi 0, %s22
      %s25 = sphi 0, %s23
      %s26 = sphi 0, %s24
      %s38 = sphi 0, %s40
      %s41 = sphi 0, %s38
      %s42 = sphi 0, %s41
      %s58 = sphi 0, %s42
      %s66 = sphi 0, %s68
      %s69 = sphi 0, %s66
      %s70 = sphi 0, %s69
      %s86 = sphi 0, %s70
      %s92 = sphi 0, %s94
      %s95 = sphi 0, %s92
      %s96 = sphi 0, %s95
      %s112 = sphi 0, %s96
    $region4: #{tpu_custom_call.1} parent=1 // loop_header_branch
      %17 = sbr.rel (%p15) target = $region8
    $region5: #{tpu_custom_call.1} parent=1 // loop_body
      %s19 = ssub.s32 %s14, 1
      %s20 = ssub.s32 %s14, 2
      %s27 = sadd.s32 1, %s22
      %p28 = scmp.ge.s32.totalorder %s27, 1
      %s29 = scalar_select %p28, 0, %s27
      %s30 = sadd.s32 1, %s21
      %s31 = scalar_select %p28, %s30, %s21
      %p32 = scmp.ge.s32.totalorder %s31, 2
      %s33 = scalar_select %p32, 0, %s31
      %s34 = ssub.s32 %s21, %s33
      %s35 = ssub.s32 %s22, %s29
      %s36 = sor.u32 %s34, %s35
      %p37 = scmp.eq.s32.totalorder %s36, 0
      %s39 = sadd.s32 %s38, 1
      %s40 = scalar_select %p37, %s38, %s39
      %p43 = pneg %p37
      %p44 = scmp.eq.s32.totalorder %s14, 1
      %p45 = por %p43, %p44
      %p46 = scmp.ne.s32.totalorder %s38, %s41
      %p47 = scmp.eq.s32.totalorder %s14, 0
      %p48 = por %p46, %p47
      %p49 = scmp.ne.s32.totalorder %s38, %s41
      %p50 = scmp.eq.s32.totalorder %s19, 1
      %p51 = por %p49, %p50
      %p52 = scmp.ne.s32.totalorder %s41, %s42
      %p53 = scmp.eq.s32.totalorder %s19, 0
      %p54 = por %p52, %p53
      %p55 = scmp.ne.s32.totalorder %s41, %s42
      %p56 = scmp.eq.s32.totalorder %s20, 1
      %p57 = por %p55, %p56
      %p59 = scmp.ne.s32.totalorder %s42, %s58
      %p60 = scmp.eq.s32.totalorder %s20, 0
      %p61 = por %p59, %p60
      %s62 = ssub.s32 %s21, %s33
      %s63 = ssub.s32 %s22, %s29
      %s64 = sor.u32 %s62, %s63
      %p65 = scmp.eq.s32.totalorder %s64, 0
      %s67 = sadd.s32 %s66, 1
      %s68 = scalar_select %p65, %s66, %s67
      %p71 = pneg %p65
      %p72 = scmp.eq.s32.totalorder %s14, 1
      %p73 = por %p71, %p72
      %p74 = scmp.ne.s32.totalorder %s66, %s69
      %p75 = scmp.eq.s32.totalorder %s14, 0
      %p76 = por %p74, %p75
      %p77 = scmp.ne.s32.totalorder %s66, %s69
      %p78 = scmp.eq.s32.totalorder %s19, 1
      %p79 = por %p77, %p78
      %p80 = scmp.ne.s32.totalorder %s69, %s70
      %p81 = scmp.eq.s32.totalorder %s19, 0
      %p82 = por %p80, %p81
      %p83 = scmp.ne.s32.totalorder %s69, %s70
      %p84 = scmp.eq.s32.totalorder %s20, 1
      %p85 = por %p83, %p84
      %p87 = scmp.ne.s32.totalorder %s70, %s86
      %p88 = scmp.eq.s32.totalorder %s20, 0
      %p89 = por %p87, %p88
      %s90 = ssub.s32 %s21, %s33
      %p91 = scmp.eq.s32.totalorder %s90, 0
      %s93 = sadd.s32 %s92, 1
      %s94 = scalar_select %p91, %s92, %s93
      %p97 = pneg %p91
      %p98 = scmp.eq.s32.totalorder %s14, 1
      %p99 = por %p97, %p98
      %p100 = scmp.ne.s32.totalorder %s92, %s95
      %p101 = scmp.eq.s32.totalorder %s14, 0
      %p102 = por %p100, %p101
      %p103 = scmp.ne.s32.totalorder %s92, %s95
      %p104 = scmp.eq.s32.totalorder %s19, 1
      %p105 = por %p103, %p104
      %p106 = scmp.ne.s32.totalorder %s95, %s96
      %p107 = scmp.eq.s32.totalorder %s19, 0
      %p108 = por %p106, %p107
      %p109 = scmp.ne.s32.totalorder %s95, %s96
      %p110 = scmp.eq.s32.totalorder %s20, 1
      %p111 = por %p109, %p110
      %p113 = scmp.ne.s32.totalorder %s96, %s112
      %p114 = scmp.eq.s32.totalorder %s20, 0
      %p115 = por %p113, %p114
      %p116 = scmp.le.s32.totalorder 1, %s14
      %p117 = scmp.lt.s32.totalorder %s14, 3
      %p118 = pnand %p116, %p117
      %p119 = pneg %p118
      // Predicated region
      $region9: #{tpu_custom_call.1} parent=5 // pred_check
        _
      $region10: #{tpu_custom_call.1} parent=5 // pred_check_branch
        %121 = sbr.rel (%p118) target = $region12
      $region11: #{tpu_custom_call.1} parent=5 // pred_region
        %s122 = ssub.s32 %s14, 1
      $region12: #{tpu_custom_call.1} parent=5 // pred_fallthru
        _
      %p123 = scmp.lt.s32.totalorder %s14, 2
      // Predicated region
      $region13: #{tpu_custom_call.1} parent=5 // pred_check
        %p124 = pneg %p123
      $region14: #{tpu_custom_call.1} parent=5 // pred_check_branch
        %126 = sbr.rel (%p124) target = $region16
      $region15: #{tpu_custom_call.1} parent=5 // pred_region
        // Predicated region
        $region17: #{tpu_custom_call.1} parent=15 // pred_check
          %p127 = pneg %p48
        $region18: #{tpu_custom_call.1} parent=15 // pred_check_branch
          %129 = sbr.rel (%p127) target = $region20
        $region19: #{tpu_custom_call.1} parent=15 // pred_region
          %s130 = sand.u32 %s38, 1
          %s131 = scalar_lea.sflag [#allocation6], %s130
          %s132 = sand.u32 %s38, 1
          %s133 = smul.addr %s132, 48
          %s134 = scalar_lea.vmem [#allocation5], %s133
          %s135 = smul.u32 2, %s22
          %s137 = ssub.s32 768, 768
          %138 = vsyncadd %s131, %s137
          %s139 = smul.addr %s21, 6
          %s140 = sadd.s32 %s135, %s139
          %s141 = smul.addr %s140, 128
          %s142 = scalar_lea.hbm %s0, %s141
          %s143 = sshll.u32 %s134, 4
          %s144 = int_to_ptr.vmem [resolvable:$true] %s143
          %149 = dma.hbm_to_vmem [thread:$0]  %s142, 768, %s144, %s131, 128, 128, 8
        $region20: #{tpu_custom_call.1} parent=15 // pred_fallthru
          _
        // Predicated region
        $region21: #{tpu_custom_call.1} parent=15 // pred_check
          %p150 = pneg %p76
        $region22: #{tpu_custom_call.1} parent=15 // pred_check_branch
          %152 = sbr.rel (%p150) target = $region24
        $region23: #{tpu_custom_call.1} parent=15 // pred_region
          %s153 = sand.u32 %s66, 1
          %s154 = scalar_lea.sflag [#allocation8], %s153
          %s155 = sand.u32 %s66, 1
          %s156 = smul.addr %s155, 48
          %s157 = scalar_lea.vmem [#allocation7], %s156
          %s158 = smul.u32 2, %s22
          %s160 = ssub.s32 768, 768
          %161 = vsyncadd %s154, %s160
          %s162 = smul.addr %s21, 6
          %s163 = sadd.s32 %s158, %s162
          %s164 = smul.addr %s163, 128
          %s165 = scalar_lea.hbm %s1, %s164
          %s166 = sshll.u32 %s157, 4
          %s167 = int_to_ptr.vmem [resolvable:$true] %s166
          %172 = dma.hbm_to_vmem [thread:$0]  %s165, 768, %s167, %s154, 128, 128, 8
        $region24: #{tpu_custom_call.1} parent=15 // pred_fallthru
          _
      $region16: #{tpu_custom_call.1} parent=5 // pred_fallthru
        _
      %p173 = scmp.le.s32.totalorder 1, %s14
      %p174 = scmp.lt.s32.totalorder %s14, 3
      %p175 = pnand %p173, %p174
      %p176 = pneg %p175
      // Predicated region
      $region25: #{tpu_custom_call.1} parent=5 // pred_check
        _
      $region26: #{tpu_custom_call.1} parent=5 // pred_check_branch
        %178 = sbr.rel (%p175) target = $region28
      $region27: #{tpu_custom_call.1} parent=5 // pred_region
        %s179 = ssub.s32 %s14, 1
        %s180 = sand.u32 %s41, 1
        %s181 = scalar_lea.sflag [#allocation6], %s180
        %s182 = sand.u32 %s41, 1
        %s183 = smul.addr %s182, 48
        %s184 = scalar_lea.vmem [#allocation5], %s183
        // Predicated region
        $region29: #{tpu_custom_call.1} parent=27 // pred_check
          %p185 = pneg %p54
        $region30: #{tpu_custom_call.1} parent=27 // pred_check_branch
          %187 = sbr.rel (%p185) target = $region32
        $region31: #{tpu_custom_call.1} parent=27 // pred_region
          %188 = dma.done %s181, 768
        $region32: #{tpu_custom_call.1} parent=27 // pred_fallthru
          _
        %s189 = sand.u32 %s69, 1
        %s190 = scalar_lea.sflag [#allocation8], %s189
        %s191 = sand.u32 %s69, 1
        %s192 = smul.addr %s191, 48
        %s193 = scalar_lea.vmem [#allocation7], %s192
        // Predicated region
        $region33: #{tpu_custom_call.1} parent=27 // pred_check
          %p194 = pneg %p82
        $region34: #{tpu_custom_call.1} parent=27 // pred_check_branch
          %196 = sbr.rel (%p194) target = $region36
        $region35: #{tpu_custom_call.1} parent=27 // pred_region
          %197 = dma.done %s190, 768
        $region36: #{tpu_custom_call.1} parent=27 // pred_fallthru
          _
        %s198 = sand.u32 %s41, 1
        %s199 = scalar_lea.sflag [#allocation6], %s198
        %s200 = sand.u32 %s41, 1
        %s201 = smul.addr %s200, 48
        %s202 = scalar_lea.vmem [#allocation5], %s201
        %p203 = pneg %p54
        %p204 = pneg %p51
        %s205 = sand.u32 %s69, 1
        %s206 = scalar_lea.sflag [#allocation8], %s205
        %s207 = sand.u32 %s69, 1
        %s208 = smul.addr %s207, 48
        %s209 = scalar_lea.vmem [#allocation7], %s208
        %p210 = pneg %p82
        %p211 = pneg %p79
        %p212 = pneg %p108
        %p213 = pneg %p105
        %p214 = scmp.lt.s32.totalorder %s23, 1
        %s215 = scalar_select %p214, %s23, 1
        %s216 = scalar_lea.vmem %s2, %s215
        %s217 = smul.u32 2, %s24
        %s218 = smul.u32 2, %s24
        %p219 = scmp.lt.s32.totalorder %s23, 1
        %s220 = scalar_select %p219, %s23, 1
        %s221 = scalar_lea.vmem %s2, %s220
        %s222 = smul.u32 %s24, 16
        %s223 = ssub.s32 %s222, 1
        %p224 = scmp.eq.s32.totalorder %s24, 0
        // Predicated region
        $region37: #{tpu_custom_call.1} parent=27 // pred_check
          %p225 = pneg %p224
        $region38: #{tpu_custom_call.1} parent=27 // pred_check_branch
          %227 = sbr.rel (%p225) target = $region40
        $region39: #{tpu_custom_call.1} parent=27 // pred_region
          %vm228 = vcmask 123904
          %229 = vst.msk [vmem:[#allocation2] sm:$0x3] %vm228, 0.0
          %230 = vst.msk [vmem:[#allocation3] sm:$0x3] %vm228, 0.0
          %vm231 = vcmask 122880
          %232 = vst.msk [vmem:[#allocation2 + $0x12] sm:$0x1] %vm231, 0.0
          %233 = vst.msk [vmem:[#allocation3 + $0x12] sm:$0x1] %vm231, 0.0
          %vm234 = vcmask 0
          %235 = vst.msk [vmem:[#allocation4] sm:$0x1] %vm234, 0.0
        $region40: #{tpu_custom_call.1} parent=27 // pred_fallthru
          _
        %p236 = scmp.gt.s32.totalorder %s24, 0
        // Predicated region
        $region41: #{tpu_custom_call.1} parent=27 // pred_check
          %p237 = pneg %p236
        $region42: #{tpu_custom_call.1} parent=27 // pred_check_branch
          %239 = sbr.rel (%p237) target = $region44
        $region43: #{tpu_custom_call.1} parent=27 // pred_region
          %v240 = vld [vmem:[#allocation2 + $0x10] sm:$0x3]
          %vm241 = vcmask 123904
          %242 = vst.msk [vmem:[#allocation2] sm:$0x3] %vm241, %v240
          %v243 = vld [vmem:[#allocation3 + $0x10] sm:$0x3]
          %244 = vst.msk [vmem:[#allocation3] sm:$0x3] %vm241, %v243
        $region44: #{tpu_custom_call.1} parent=27 // pred_fallthru
          _
        %v245 = vld [vmem:[%s184] sm:$0xff]
        %s246 = sadd.s32 0, 16
        %s247 = scalar_lea.vmem %s184, %s246 [#allocation5]
        %v248 = vld [vmem:[%s247] sm:$0xff]
        %v249 = vadd.f32 %v245, %v248
        %s250 = sadd.s32 0, 32
        %s251 = scalar_lea.vmem %s184, %s250 [#allocation5]
        %v252 = vld [vmem:[%s251] sm:$0xff]
        %v253 = vadd.f32 %v249, %v252
        %s254 = sadd.s32 0, 2
        %s255 = scalar_lea.vmem [#allocation2], %s254
        %vm256 = vcmask 130048
        %257 = vst.msk [vmem:[%s255] sm:$0xff] %vm256, %v253
        %v258 = vld [vmem:[%s193] sm:$0xff]
        %s259 = scalar_lea.vmem %s193, %s246 [#allocation7]
        %v260 = vld [vmem:[%s259] sm:$0xff]
        %v261 = vadd.f32 %v258, %v260
        %s262 = scalar_lea.vmem %s193, %s250 [#allocation7]
        %v263 = vld [vmem:[%s262] sm:$0xff]
        %v264 = vadd.f32 %v261, %v263
        %s265 = scalar_lea.vmem [#allocation3], %s254
        %266 = vst.msk [vmem:[%s265] sm:$0xff] %vm256, %v264
        %v267 = vld [vmem:[#allocation2] sm:$0xff]
        %v268 = vld [vmem:[#allocation2 + $0x8] sm:$0x3]
        %271 = vrot.lane.b32.xlu0 %v267, 1
        %v272 = vpop.permute.xlu0 %271
        %273 = vrot.lane.b32.xlu0 %v268, 1
        %v274 = vpop.permute.xlu0 %273
        %vm277 = vcmask 7168
        %v278 = vsel %vm277, 0.0, %v272
        %v279 = vsel %vm277, 0.0, %v274
        %280 = vrot.lane.b32.xlu0 %v267, 127
        %v281 = vpop.permute.xlu0 %280
        %282 = vrot.lane.b32.xlu0 %v268, 127
        %v283 = vpop.permute.xlu0 %282
        %vm286 = vcmask 121856
        %v287 = vsel %vm286, %v281, 0.0
        %v288 = vsel %vm286, %v283, 0.0
        %v289 = vsub.f32 %v287, %v278
        %v290 = vsub.f32 %v288, %v279
        %v291 = vmul.f32 %v267, 2.0
        %v292 = vmul.f32 %v268, 2.0
        %v293 = vadd.f32 %v278, %v291
        %v294 = vadd.f32 %v279, %v292
        %v295 = vadd.f32 %v293, %v287
        %v296 = vadd.f32 %v294, %v288
        %v297 = vmul.f32 %v289, 2.0
        %v298 = vmul.f32 %v290, 2.0
        %vm301 = vcmask 1046528
        %v302 = vrot.slane %v297, 1
        %v303 = vrot.slane %v298, 1
        %v304 = vsel %vm301, %v302, %v303
        %v306 = vadd.f32 %v289, %v304
        %vm309 = vcmask 1045504
        %v310 = vrot.slane %v289, 2
        %v311 = vrot.slane %v290, 2
        %v312 = vsel %vm309, %v310, %v311
        %v314 = vadd.f32 %v306, %v312
        %v316 = vrot.slane %v295, 6
        %v318 = vsub.f32 %v295, %v316
        %v319 = vsub.f32 %v296, %v316
        %v320 = vand.u32 2147483647, %v314
        %v321 = vand.u32 2147483647, %v318
        %v322 = vand.u32 2147483647, %v319
        %v325 = vrot.slane %v321, 2
        %v326 = vrot.slane %v322, 2
        %v327 = vsel %vm309, %v325, %v326
        %v329 = vadd.f32 %v320, %v327
        %v330 = vld [vmem:[#allocation3] sm:$0xff]
        %v331 = vld [vmem:[#allocation3 + $0x8] sm:$0x3]
        %334 = vrot.lane.b32.xlu0 %v330, 1
        %v335 = vpop.permute.xlu0 %334
        %336 = vrot.lane.b32.xlu0 %v331, 1
        %v337 = vpop.permute.xlu0 %336
        %v340 = vsel %vm277, 0.0, %v335
        %v341 = vsel %vm277, 0.0, %v337
        %342 = vrot.lane.b32.xlu0 %v330, 127
        %v343 = vpop.permute.xlu0 %342
        %344 = vrot.lane.b32.xlu0 %v331, 127
        %v345 = vpop.permute.xlu0 %344
        %v348 = vsel %vm286, %v343, 0.0
        %v349 = vsel %vm286, %v345, 0.0
        %v350 = vsub.f32 %v348, %v340
        %v351 = vsub.f32 %v349, %v341
        %v352 = vmul.f32 %v330, 2.0
        %v353 = vmul.f32 %v331, 2.0
        %v354 = vadd.f32 %v340, %v352
        %v355 = vadd.f32 %v341, %v353
        %v356 = vadd.f32 %v354, %v348
        %v357 = vadd.f32 %v355, %v349
        %v358 = vmul.f32 %v350, 2.0
        %v359 = vmul.f32 %v351, 2.0
        %v362 = vrot.slane %v358, 1
        %v363 = vrot.slane %v359, 1
        %v364 = vsel %vm301, %v362, %v363
        %v366 = vadd.f32 %v350, %v364
        %v369 = vrot.slane %v350, 2
        %v370 = vrot.slane %v351, 2
        %v371 = vsel %vm309, %v369, %v370
        %v373 = vadd.f32 %v366, %v371
        %v375 = vrot.slane %v356, 6
        %v377 = vsub.f32 %v356, %v375
        %v378 = vsub.f32 %v357, %v375
        %v379 = vand.u32 2147483647, %v373
        %v380 = vand.u32 2147483647, %v377
        %v381 = vand.u32 2147483647, %v378
        %v384 = vrot.slane %v380, 2
        %v385 = vrot.slane %v381, 2
        %v386 = vsel %vm309, %v384, %v385
        %v388 = vadd.f32 %v379, %v386
        %v389 = vsub.f32 %v329, %v388
        %v390 = vand.u32 2147483647, %v389
        %v391 = vsel %vm256, %v390, 0.0
        %392 = vadd.xlane.f32.xlu0 %v391
        %v393 = vpop.xlane.xlu0 %392
        %s394 = sadd.s32 %s223, 0
        %v395 = vlaneseq
        %v396 = vshrl.u32 %v395, 7
        %v397 = vstv %s394
        %v398 = vadd.s32 %v397, %v396
        %vm399 = vcmp.ge.s32.totalorder %v398, 0
        %vm400 = vcmp.lt.s32.totalorder %v398, 16
        %vm401 = vmand %vm399, %vm400
        %v402 = vsel %vm401, %v393, 0.0
        %v403 = vsel %vm277, %v402, 0.0
        %404 = vadd.xlane.f32.xlu0 %v403
        %v405 = vpop.xlane.xlu0 %404
        %v406 = vrot.slane %v405, 4
        %v407 = vadd.f32 %v405, %v406
        %v408 = vrot.slane %v407, 2
        %v409 = vadd.f32 %v407, %v408
        %v410 = vrot.slane %v409, 1
        %v411 = vadd.f32 %v409, %v410
        %s412 = vtos %v411
        %s413 = sadd.f32 %s412, 0.0
        %s414 = scalar_lea.vmem %s184, 8 [#allocation5]
        %v415 = vld [vmem:[%s414] sm:$0xff]
        %s416 = sadd.s32 8, 16
        %s417 = scalar_lea.vmem %s184, %s416 [#allocation5]
        %v418 = vld [vmem:[%s417] sm:$0xff]
        %v419 = vadd.f32 %v415, %v418
        %s420 = sadd.s32 8, 32
        %s421 = scalar_lea.vmem %s184, %s420 [#allocation5]
        %v422 = vld [vmem:[%s421] sm:$0xff]
        %v423 = vadd.f32 %v419, %v422
        %s424 = sadd.s32 8, 2
        %s425 = scalar_lea.vmem [#allocation2], %s424
        %426 = vst.msk [vmem:[%s425] sm:$0xff] %vm256, %v423
        %s427 = scalar_lea.vmem %s193, 8 [#allocation7]
        %v428 = vld [vmem:[%s427] sm:$0xff]
        %s429 = scalar_lea.vmem %s193, %s416 [#allocation7]
        %v430 = vld [vmem:[%s429] sm:$0xff]
        %v431 = vadd.f32 %v428, %v430
        %s432 = scalar_lea.vmem %s193, %s420 [#allocation7]
        %v433 = vld [vmem:[%s432] sm:$0xff]
        %v434 = vadd.f32 %v431, %v433
        %s435 = scalar_lea.vmem [#allocation3], %s424
        %436 = vst.msk [vmem:[%s435] sm:$0xff] %vm256, %v434
        %s437 = scalar_lea.vmem [#allocation2], 8
        %v438 = vld [vmem:[%s437] sm:$0xff]
        %v439 = vld [vmem:[%s437 + $0x8] sm:$0x3]
        %442 = vrot.lane.b32.xlu0 %v438, 1
        %v443 = vpop.permute.xlu0 %442
        %444 = vrot.lane.b32.xlu0 %v439, 1
        %v445 = vpop.permute.xlu0 %444
        %v448 = vsel %vm277, 0.0, %v443
        %v449 = vsel %vm277, 0.0, %v445
        %450 = vrot.lane.b32.xlu0 %v438, 127
        %v451 = vpop.permute.xlu0 %450
        %452 = vrot.lane.b32.xlu0 %v439, 127
        %v453 = vpop.permute.xlu0 %452
        %v456 = vsel %vm286, %v451, 0.0
        %v457 = vsel %vm286, %v453, 0.0
        %v458 = vsub.f32 %v456, %v448
        %v459 = vsub.f32 %v457, %v449
        %v460 = vmul.f32 %v438, 2.0
        %v461 = vmul.f32 %v439, 2.0
        %v462 = vadd.f32 %v448, %v460
        %v463 = vadd.f32 %v449, %v461
        %v464 = vadd.f32 %v462, %v456
        %v465 = vadd.f32 %v463, %v457
        %v466 = vmul.f32 %v458, 2.0
        %v467 = vmul.f32 %v459, 2.0
        %v470 = vrot.slane %v466, 1
        %v471 = vrot.slane %v467, 1
        %v472 = vsel %vm301, %v470, %v471
        %v474 = vadd.f32 %v458, %v472
        %v477 = vrot.slane %v458, 2
        %v478 = vrot.slane %v459, 2
        %v479 = vsel %vm309, %v477, %v478
        %v481 = vadd.f32 %v474, %v479
        %v483 = vrot.slane %v464, 6
        %v485 = vsub.f32 %v464, %v483
        %v486 = vsub.f32 %v465, %v483
        %v487 = vand.u32 2147483647, %v481
        %v488 = vand.u32 2147483647, %v485
        %v489 = vand.u32 2147483647, %v486
        %v492 = vrot.slane %v488, 2
        %v493 = vrot.slane %v489, 2
        %v494 = vsel %vm309, %v492, %v493
        %v496 = vadd.f32 %v487, %v494
        %s497 = scalar_lea.vmem [#allocation3], 8
        %v498 = vld [vmem:[%s497] sm:$0xff]
        %v499 = vld [vmem:[%s497 + $0x8] sm:$0x3]
        %502 = vrot.lane.b32.xlu0 %v498, 1
        %v503 = vpop.permute.xlu0 %502
        %504 = vrot.lane.b32.xlu0 %v499, 1
        %v505 = vpop.permute.xlu0 %504
        %v508 = vsel %vm277, 0.0, %v503
        %v509 = vsel %vm277, 0.0, %v505
        %510 = vrot.lane.b32.xlu0 %v498, 127
        %v511 = vpop.permute.xlu0 %510
        %512 = vrot.lane.b32.xlu0 %v499, 127
        %v513 = vpop.permute.xlu0 %512
        %v516 = vsel %vm286, %v511, 0.0
        %v517 = vsel %vm286, %v513, 0.0
        %v518 = vsub.f32 %v516, %v508
        %v519 = vsub.f32 %v517, %v509
        %v520 = vmul.f32 %v498, 2.0
        %v521 = vmul.f32 %v499, 2.0
        %v522 = vadd.f32 %v508, %v520
        %v523 = vadd.f32 %v509, %v521
        %v524 = vadd.f32 %v522, %v516
        %v525 = vadd.f32 %v523, %v517
        %v526 = vmul.f32 %v518, 2.0
        %v527 = vmul.f32 %v519, 2.0
        %v530 = vrot.slane %v526, 1
        %v531 = vrot.slane %v527, 1
        %v532 = vsel %vm301, %v530, %v531
        %v534 = vadd.f32 %v518, %v532
        %v537 = vrot.slane %v518, 2
        %v538 = vrot.slane %v519, 2
        %v539 = vsel %vm309, %v537, %v538
        %v541 = vadd.f32 %v534, %v539
        %v543 = vrot.slane %v524, 6
        %v545 = vsub.f32 %v524, %v543
        %v546 = vsub.f32 %v525, %v543
        %v547 = vand.u32 2147483647, %v541
        %v548 = vand.u32 2147483647, %v545
        %v549 = vand.u32 2147483647, %v546
        %v552 = vrot.slane %v548, 2
        %v553 = vrot.slane %v549, 2
        %v554 = vsel %vm309, %v552, %v553
        %v556 = vadd.f32 %v547, %v554
        %v557 = vsub.f32 %v496, %v556
        %v558 = vand.u32 2147483647, %v557
        %v559 = vsel %vm256, %v558, 0.0
        %560 = vadd.xlane.f32.xlu0 %v559
        %v561 = vpop.xlane.xlu0 %560
        %s562 = sadd.s32 %s223, 8
        %v563 = vstv %s562
        %v564 = vadd.s32 %v563, %v396
        %vm565 = vcmp.ge.s32.totalorder %v564, 0
        %vm566 = vcmp.lt.s32.totalorder %v564, 16
        %vm567 = vmand %vm565, %vm566
        %v568 = vsel %vm567, %v561, 0.0
        %v569 = vsel %vm277, %v568, 0.0
        %570 = vadd.xlane.f32.xlu0 %v569
        %v571 = vpop.xlane.xlu0 %570
        %v572 = vrot.slane %v571, 4
        %v573 = vadd.f32 %v571, %v572
        %v574 = vrot.slane %v573, 2
        %v575 = vadd.f32 %v573, %v574
        %v576 = vrot.slane %v575, 1
        %v577 = vadd.f32 %v575, %v576
        %s578 = vtos %v577
        %s579 = sadd.f32 %s413, %s578
        %v580 = vld [vmem:[#allocation4] sm:$0x1]
        %v581 = vstv %s579
        %v582 = vadd.f32 %v580, %v581
        %vm583 = vcmask 0
        %584 = vst.msk [vmem:[#allocation4] sm:$0x1] %vm583, %v582
        // Predicated region
        $region45: #{tpu_custom_call.1} parent=27 // pred_check
          %p585 = pneg %p224
        $region46: #{tpu_custom_call.1} parent=27 // pred_check_branch
          %587 = sbr.rel (%p585) target = $region48
        $region47: #{tpu_custom_call.1} parent=27 // pred_region
          %v588 = vld [vmem:[#allocation4] sm:$0x1]
          %v589 = vld [vmem:[#allocation2 + $0x10] sm:$0x7]
          %591 = vrot.lane.b32.xlu0 %v589, 1
          %v592 = vpop.permute.xlu0 %591
          %v594 = vsel %vm277, 0.0, %v592
          %595 = vrot.lane.b32.xlu0 %v589, 127
          %v596 = vpop.permute.xlu0 %595
          %v598 = vsel %vm286, %v596, 0.0
          %v599 = vsub.f32 %v598, %v594
          %v600 = vmul.f32 %v589, 2.0
          %v601 = vadd.f32 %v594, %v600
          %v602 = vadd.f32 %v601, %v598
          %v603 = vmul.f32 %v599, 2.0
          %v605 = vrot.slane %v603, 1
          %v607 = vadd.f32 %v599, %v605
          %v609 = vrot.slane %v599, 2
          %v611 = vadd.f32 %v607, %v609
          %v613 = vrot.slane %v602, 6
          %v615 = vsub.f32 %v602, %v613
          %v616 = vand.u32 2147483647, %v611
          %v617 = vand.u32 2147483647, %v615
          %v619 = vrot.slane %v617, 2
          %v621 = vadd.f32 %v616, %v619
          %v622 = vld [vmem:[#allocation3 + $0x10] sm:$0x7]
          %624 = vrot.lane.b32.xlu0 %v622, 1
          %v625 = vpop.permute.xlu0 %624
          %v627 = vsel %vm277, 0.0, %v625
          %628 = vrot.lane.b32.xlu0 %v622, 127
          %v629 = vpop.permute.xlu0 %628
          %v631 = vsel %vm286, %v629, 0.0
          %v632 = vsub.f32 %v631, %v627
          %v633 = vmul.f32 %v622, 2.0
          %v634 = vadd.f32 %v627, %v633
          %v635 = vadd.f32 %v634, %v631
          %v636 = vmul.f32 %v632, 2.0
          %v638 = vrot.slane %v636, 1
          %v640 = vadd.f32 %v632, %v638
          %v642 = vrot.slane %v632, 2
          %v644 = vadd.f32 %v640, %v642
          %v646 = vrot.slane %v635, 6
          %v648 = vsub.f32 %v635, %v646
          %v649 = vand.u32 2147483647, %v644
          %v650 = vand.u32 2147483647, %v648
          %v652 = vrot.slane %v650, 2
          %v654 = vadd.f32 %v649, %v652
          %v655 = vsub.f32 %v621, %v654
          %v656 = vand.u32 2147483647, %v655
          %vm657 = vcmask 122880
          %v658 = vsel %vm657, %v656, 0.0
          %659 = vadd.xlane.f32.xlu0 %v658
          %v660 = vpop.xlane.xlu0 %659
          %s661 = sadd.s32 %s222, 15
          %v662 = vstv %s661
          %v663 = vadd.s32 %v662, %v396
          %vm664 = vcmp.ge.s32.totalorder %v663, 0
          %vm665 = vcmp.lt.s32.totalorder %v663, 16
          %vm666 = vmand %vm664, %vm665
          %v667 = vsel %vm666, %v660, 0.0
          %v668 = vadd.f32 %v667, 0.0
          %s669 = vtos %v668
          %v670 = vstv %s669
          %v671 = vadd.f32 %v588, %v670
          %672 = vst.msk [vmem:[#allocation4] sm:$0x1] %vm583, %v671
          %v673 = vld [vmem:[#allocation4] sm:$0x1]
          %674 = vst.msk [vmem:[%s221] sm:$0x1] %vm583, %v673
        $region48: #{tpu_custom_call.1} parent=27 // pred_fallthru
          _
        %p675 = scmp.lt.s32.totalorder %s23, 1
        %s676 = scalar_select %p675, %s23, 1
        %s677 = scalar_lea.vmem %s2, %s676
        // Predicated region
        $region49: #{tpu_custom_call.1} parent=27 // pred_check
          %p678 = pneg %p105
        $region50: #{tpu_custom_call.1} parent=27 // pred_check_branch
          %680 = sbr.rel (%p678) target = $region52
        $region51: #{tpu_custom_call.1} parent=27 // pred_region
          _
        $region52: #{tpu_custom_call.1} parent=27 // pred_fallthru
          _
      $region28: #{tpu_custom_call.1} parent=5 // pred_fallthru
        _
      %p681 = scmp.le.s32.totalorder 2, %s14
      // Predicated region
      $region53: #{tpu_custom_call.1} parent=5 // pred_check
        %p682 = pneg %p681
      $region54: #{tpu_custom_call.1} parent=5 // pred_check_branch
        %684 = sbr.rel (%p682) target = $region56
      $region55: #{tpu_custom_call.1} parent=5 // pred_region
        %s685 = ssub.s32 %s14, 2
        // Predicated region
        $region57: #{tpu_custom_call.1} parent=55 // pred_check
          %p686 = pneg %p111
        $region58: #{tpu_custom_call.1} parent=55 // pred_check_branch
          %688 = sbr.rel (%p686) target = $region60
        $region59: #{tpu_custom_call.1} parent=55 // pred_region
          %p689 = scmp.lt.s32.totalorder %s25, 1
          %s690 = scalar_select %p689, %s25, 1
          %s691 = scalar_lea.vmem %s2, %s690
        $region60: #{tpu_custom_call.1} parent=55 // pred_fallthru
          _
      $region56: #{tpu_custom_call.1} parent=5 // pred_fallthru
        _
    $region6: #{tpu_custom_call.1} parent=1 // loop_footer
      %s18 = sadd.s32 1, %s14
    $region7: #{tpu_custom_call.1} parent=1 // loop_footer_branch
      %13 = sbr.rel target = $region3
    $region8: #{tpu_custom_call.1} parent=1 // loop_exit
      _
    %692 = vsyncpa [#allocation6], 1
    %s693 = scalar_lea.sflag [#allocation6], 1
    %694 = vsyncpa %s693, 1
    %695 = vsyncpa [#allocation8], 1
    %s696 = scalar_lea.sflag [#allocation8], 1
    %697 = vsyncpa %s696, 1

</llo_original>
